<compile_context>
chip_gen: v5e
topology: v5e:2x2
jax: 0.10.0
libtpu: 0.0.40
codegen_flags: <defaults>
</compile_context>

<pallas_src>
import functools

import jax
import jax.numpy as jnp
from jax import lax
from jax.experimental import pallas as pl
from jax.experimental.pallas import tpu as pltpu

EPS = 1e-5  # nn.LayerNorm default eps


def _layer_norm(y, gamma, beta):
    """Centered two-pass LayerNorm over the last axis (f32)."""
    f = y.shape[-1]
    mean = jnp.sum(y, axis=-1, keepdims=True) * (1.0 / f)
    yc = y - mean
    var = jnp.sum(yc * yc, axis=-1, keepdims=True) * (1.0 / f)
    return yc * lax.rsqrt(var + EPS) * gamma + beta


def _shift_down(z):
    """result[t] = z[t-1]; row 0 zeroed (per-utterance mask applied by caller too)."""
    zero = jnp.zeros((1, z.shape[1]), z.dtype)
    return jnp.concatenate([zero, z[:-1, :]], axis=0)


def _shift_up(z):
    """result[t] = z[t+1]; last row zeroed (per-utterance mask applied by caller too)."""
    zero = jnp.zeros((1, z.shape[1]), z.dtype)
    return jnp.concatenate([z[1:, :], zero], axis=0)


def _duration_predictor_kernel(x_ref, w1_ref, w2_ref, vec_ref, o_ref, *, seq_len):
    tile_n = x_ref.shape[0]
    mm_dtype = x_ref.dtype                   # bf16 (default) or f32

    vec = vec_ref[...]                       # (8, F) f32 parameter slab
    b1, g1, be1 = vec[0:1], vec[1:2], vec[2:3]
    b2, g2, be2 = vec[3:4], vec[4:5], vec[5:6]
    wl = vec[6:7]                            # (1, F)  linear weight row
    bl = vec[7:8, 0:1]                       # (1, 1)  linear bias

    # Time position of each row within its utterance (tiles cover whole utterances,
    # so global_row % T == local formula below even with the program_id offset).
    row0 = pl.program_id(0) * tile_n
    tpos = (row0 + lax.broadcasted_iota(jnp.int32, (tile_n, 1), 0)) % seq_len
    is_first = tpos == 0
    is_last = tpos == seq_len - 1

    def conv_ln_relu(xin_mm, w_ref, b, g, be):
        # w_ref: (3, C, F); tap 0 multiplies x[t-1], tap 1 x[t], tap 2 x[t+1].
        z_prev = jnp.dot(xin_mm, w_ref[0], preferred_element_type=jnp.float32)
        z_ctr = jnp.dot(xin_mm, w_ref[1], preferred_element_type=jnp.float32)
        z_next = jnp.dot(xin_mm, w_ref[2], preferred_element_type=jnp.float32)
        y = z_ctr + b
        y = y + jnp.where(is_first, 0.0, _shift_down(z_prev))
        y = y + jnp.where(is_last, 0.0, _shift_up(z_next))
        return jnp.maximum(_layer_norm(y, g, be), 0.0)

    h = conv_ln_relu(x_ref[...], w1_ref, b1, g1, be1)     # (tile_n, F) f32
    # dropout == identity at inference
    h = conv_ln_relu(h.astype(mm_dtype), w2_ref, b2, g2, be2)

    # Final F->1 projection, lane-dense: (1,F) contracted with (tile_n,F) -> (1,tile_n).
    out_row = lax.dot_general(
        wl, h, (((1,), (1,)), ((), ())), preferred_element_type=jnp.float32) + bl
    o_ref[0] = out_row.astype(o_ref.dtype)


def duration_predictor(x, params, *, matmul_dtype=jnp.bfloat16, max_tile_rows=1024):
    """x: (B, T, in_dim) float32 -> (B, T) float32."""
    B, T, Cin = x.shape
    Fs = params["conv1_w"].shape[0]
    n = B * T

    # Row tile = whole utterances per tile (multiple of 16 sublanes for bf16 packing)
    # so the k=3 conv never needs a halo; fall back to one block otherwise.
    tile_rows = None
    for u in range(1, B + 1):
        if B % u:
            continue
        rows = u * T
        if rows % 16 == 0 and rows <= max_tile_rows:
            tile_rows = rows
    if tile_rows is None:
        tile_rows = n  # TODO(synk): add 1-row halo tiling if a single utterance must be split
    num_tiles = n // tile_rows

    # Per-tap weight slabs: tap k multiplies x[t-1+k]; each tap transposed to (Cin, F).
    w1p = jnp.stack([params["conv1_w"][:, :, k].T for k in range(3)],
                    axis=0).astype(matmul_dtype)                          # (3, Cin, F)
    w2p = jnp.stack([params["conv2_w"][:, :, k].T for k in range(3)],
                    axis=0).astype(matmul_dtype)                          # (3, F, F)

    # One (8, F) f32 slab of all small parameters.
    bl_row = jnp.zeros((Fs,), jnp.float32).at[0].set(params["lin_b"][0])
    vec = jnp.stack([
        params["conv1_b"], params["ln1_g"], params["ln1_b"],
        params["conv2_b"], params["ln2_g"], params["ln2_b"],
        params["lin_w"][0], bl_row,
    ], axis=0).astype(jnp.float32)                                        # (8, F)

    x2 = x.reshape(n, Cin).astype(matmul_dtype)

    kernel = functools.partial(_duration_predictor_kernel, seq_len=T)

    flops = 2 * n * (3 * Cin * Fs + 3 * Fs * Fs + Fs)
    bytes_accessed = (x2.size * x2.dtype.itemsize
                      + w1p.size * w1p.dtype.itemsize
                      + w2p.size * w2p.dtype.itemsize
                      + vec.size * 4 + n * 4)

    grid_spec = pltpu.PrefetchScalarGridSpec(
        num_scalar_prefetch=0,
        grid=(num_tiles,),
        in_specs=[
            pl.BlockSpec((tile_rows, Cin), lambda i: (i, 0)),
            pl.BlockSpec(w1p.shape, lambda i: (0, 0, 0)),   # VMEM-resident across tiles
            pl.BlockSpec(w2p.shape, lambda i: (0, 0, 0)),
            pl.BlockSpec(vec.shape, lambda i: (0, 0)),
        ],
        out_specs=pl.BlockSpec((1, 1, tile_rows), lambda i: (i, 0, 0)),
    )

    out = pl.pallas_call(
        kernel,
        out_shape=jax.ShapeDtypeStruct((num_tiles, 1, tile_rows), jnp.float32),
        grid_spec=grid_spec,
        compiler_params=pltpu.CompilerParams(
            dimension_semantics=("parallel",),        # tiles are whole utterances
            vmem_limit_bytes=48 * 1024 * 1024),
        cost_estimate=pl.CostEstimate(flops=flops, transcendentals=2 * n,
                                      bytes_accessed=bytes_accessed),
    )(x2, w1p, w2p, vec)
    return out.reshape(B, T)


# ----------------------- pure-JAX reference (for checking) -----------------------
def reference(x, p):
    def conv1d(x_btc, w, b):  # w: (Cout, Cin, 3), padding=1
        T = x_btc.shape[1]
        xp = jnp.pad(x_btc, ((0, 0), (1, 1), (0, 0)))
        y = sum(jnp.einsum("btc,oc->bto", xp[:, k:k + T, :], w[:, :, k]) for k in range(3))
        return y + b

    def ln(y, g, b):
        m = jnp.mean(y, axis=-1, keepdims=True)
        v = jnp.mean((y - m) ** 2, axis=-1, keepdims=True)
        return (y - m) / jnp.sqrt(v + EPS) * g + b

    h = conv1d(x, p["conv1_w"], p["conv1_b"])
    h = jax.nn.relu(ln(h, p["ln1_g"], p["ln1_b"]))
    h = conv1d(h, p["conv2_w"], p["conv2_b"])
    h = jax.nn.relu(ln(h, p["ln2_g"], p["ln2_b"]))
    return (h @ p["lin_w"].T + p["lin_b"])[..., 0]


def make_params(key, in_dim, filter_size, kernel_size=3):
    ks = jax.random.split(key, 6)
    s1 = 1.0 / jnp.sqrt(in_dim * kernel_size)
    s2 = 1.0 / jnp.sqrt(filter_size * kernel_size)
    s3 = 1.0 / jnp.sqrt(filter_size)
    return {
        "conv1_w": jax.random.normal(ks[0], (filter_size, in_dim, kernel_size), jnp.float32) * s1,
        "conv1_b": jax.random.normal(ks[1], (filter_size,), jnp.float32) * s1,
        "ln1_g": jnp.ones((filter_size,), jnp.float32),
        "ln1_b": jnp.zeros((filter_size,), jnp.float32),
        "conv2_w": jax.random.normal(ks[2], (filter_size, filter_size, kernel_size), jnp.float32) * s2,
        "conv2_b": jax.random.normal(ks[3], (filter_size,), jnp.float32) * s2,
        "ln2_g": jnp.ones((filter_size,), jnp.float32),
        "ln2_b": jnp.zeros((filter_size,), jnp.float32),
        "lin_w": jax.random.normal(ks[4], (1, filter_size), jnp.float32) * s3,
        "lin_b": jax.random.normal(ks[5], (1,), jnp.float32) * s3,
    }


if __name__ == "__main__":
    B, T, IN_DIM, FILTER = 2, 16, 32, 64
    key = jax.random.PRNGKey(0)
    kx, kp = jax.random.split(key)
    x = jax.random.normal(kx, (B, T, IN_DIM), jnp.float32)
    params = make_params(kp, IN_DIM, FILTER)

    ref = reference(x, params)

    # f32 MXU path: strict check against the reference.
    out_f32 = jax.block_until_ready(
        duration_predictor(x, params, matmul_dtype=jnp.float32))
    assert out_f32.shape == (B, T)
    assert jnp.allclose(out_f32, ref, rtol=1e-4, atol=1e-4), "f32 kernel mismatch vs reference"

    # Default bf16 MXU path (single tile at this toy size).
    out_bf16 = jax.block_until_ready(duration_predictor(x, params))
    assert out_bf16.shape == (B, T)
    assert float(jnp.max(jnp.abs(out_bf16 - ref))) < 0.1, "bf16 kernel deviates too much"

    # Force the multi-tile (per-utterance) path: 2 tiles of one utterance each.
    out_tiled = jax.block_until_ready(
        duration_predictor(x, params, max_tile_rows=16))
    assert out_tiled.shape == (B, T)
    assert float(jnp.max(jnp.abs(out_tiled - ref))) < 0.1, "tiled kernel deviates too much"

    print("KERNEL_OK")
</pallas_src>

<mosaic_0001>
module attributes {stable_mosaic.version = 11 : i64} {
  func.func @_duration_predictor_kernel(%arg0: i32, %arg1: memref<32x32xf32, #tpu.memory_space<vmem>>, %arg2: memref<3x32x64xf32, #tpu.memory_space<vmem>>, %arg3: memref<3x64x64xf32, #tpu.memory_space<vmem>>, %arg4: memref<8x64xf32, #tpu.memory_space<vmem>>, %arg5: memref<1x1x32xf32, #tpu.memory_space<vmem>>) attributes {dimension_semantics = [#tpu.dimension_semantics<parallel>], iteration_bounds = array<i64: 1>, scalar_prefetch = 0 : i64, scratch_operands = 0 : i64, tpu.core_type = #tpu.core_type<tc>, window_params = [{transform_indices = @transform_0, window_bounds = array<i64: 32, 32>}, {pipeline_mode = #tpu.pipeline_mode<synchronous>, transform_indices = @transform_1, window_bounds = array<i64: 3, 32, 64>}, {pipeline_mode = #tpu.pipeline_mode<synchronous>, transform_indices = @transform_2, window_bounds = array<i64: 3, 64, 64>}, {pipeline_mode = #tpu.pipeline_mode<synchronous>, transform_indices = @transform_3, window_bounds = array<i64: 8, 64>}, {transform_indices = @transform_4, window_bounds = array<i64: 1, 1, 32>}]} {
    %c0 = arith.constant 0 : index
    %c0_0 = arith.constant 0 : index
    %0 = vector.load %arg4[%c0, %c0_0] : memref<8x64xf32, #tpu.memory_space<vmem>>, vector<8x64xf32>
    %1 = vector.extract_strided_slice %0 {offsets = [0, 0], sizes = [1, 64], strides = [1, 1]} : vector<8x64xf32> to vector<1x64xf32>
    %2 = vector.extract_strided_slice %0 {offsets = [1, 0], sizes = [1, 64], strides = [1, 1]} : vector<8x64xf32> to vector<1x64xf32>
    %3 = vector.extract_strided_slice %0 {offsets = [2, 0], sizes = [1, 64], strides = [1, 1]} : vector<8x64xf32> to vector<1x64xf32>
    %4 = vector.extract_strided_slice %0 {offsets = [3, 0], sizes = [1, 64], strides = [1, 1]} : vector<8x64xf32> to vector<1x64xf32>
    %5 = vector.extract_strided_slice %0 {offsets = [4, 0], sizes = [1, 64], strides = [1, 1]} : vector<8x64xf32> to vector<1x64xf32>
    %6 = vector.extract_strided_slice %0 {offsets = [5, 0], sizes = [1, 64], strides = [1, 1]} : vector<8x64xf32> to vector<1x64xf32>
    %7 = vector.extract_strided_slice %0 {offsets = [6, 0], sizes = [1, 64], strides = [1, 1]} : vector<8x64xf32> to vector<1x64xf32>
    %8 = vector.extract_strided_slice %0 {offsets = [7, 0], sizes = [1, 1], strides = [1, 1]} : vector<8x64xf32> to vector<1x1xf32>
    %c32_i32 = arith.constant 32 : i32
    %9 = arith.muli %arg0, %c32_i32 : i32
    %10 = tpu.iota {dimensions = array<i32: 0>} : vector<32x1xi32>
    %11 = vector.broadcast %9 : i32 to vector<32x1xi32>
    %12 = arith.addi %11, %10 : vector<32x1xi32>
    %c16_i32 = arith.constant 16 : i32
    %c0_i32 = arith.constant 0 : i32
    %13 = arith.cmpi eq, %c16_i32, %c0_i32 : i32
    %c1_i32 = arith.constant 1 : i32
    %14 = arith.select %13, %c1_i32, %c16_i32 : i32
    %15 = vector.broadcast %14 : i32 to vector<32x1xi32>
    %16 = arith.remsi %12, %15 : vector<32x1xi32>
    %c0_i32_1 = arith.constant 0 : i32
    %17 = vector.broadcast %c0_i32_1 : i32 to vector<32x1xi32>
    %18 = arith.cmpi ne, %16, %17 : vector<32x1xi32>
    %c0_i32_2 = arith.constant 0 : i32
    %19 = vector.broadcast %c0_i32_2 : i32 to vector<32x1xi32>
    %20 = arith.cmpi slt, %16, %19 : vector<32x1xi32>
    %c0_i32_3 = arith.constant 0 : i32
    %21 = arith.cmpi slt, %14, %c0_i32_3 : i32
    %22 = vector.broadcast %21 : i1 to vector<32x1xi1>
    %23 = vector.broadcast %22 : vector<32x1xi1> to vector<32x1xi1>
    %24 = arith.xori %20, %23 : vector<32x1xi1>
    %25 = arith.andi %24, %18 : vector<32x1xi1>
    %26 = vector.broadcast %14 : i32 to vector<32x1xi32>
    %27 = arith.addi %16, %26 : vector<32x1xi32>
    %28 = arith.select %25, %27, %16 : vector<32x1xi1>, vector<32x1xi32>
    %c0_i32_4 = arith.constant 0 : i32
    %29 = vector.broadcast %c0_i32_4 : i32 to vector<32x1xi32>
    %30 = arith.cmpi eq, %28, %29 : vector<32x1xi32>
    %c15_i32 = arith.constant 15 : i32
    %31 = vector.broadcast %c15_i32 : i32 to vector<32x1xi32>
    %32 = arith.cmpi eq, %28, %31 : vector<32x1xi32>
    %c0_5 = arith.constant 0 : index
    %c0_6 = arith.constant 0 : index
    %33 = vector.load %arg1[%c0_5, %c0_6] : memref<32x32xf32, #tpu.memory_space<vmem>>, vector<32x32xf32>
    %c0_7 = arith.constant 0 : index
    %c0_8 = arith.constant 0 : index
    %c0_9 = arith.constant 0 : index
    %34 = vector.load %arg2[%c0_7, %c0_8, %c0_9] : memref<3x32x64xf32, #tpu.memory_space<vmem>>, vector<1x32x64xf32>
    %35 = vector.shape_cast %34 : vector<1x32x64xf32> to vector<32x64xf32>
    %cst = arith.constant dense<0.000000e+00> : vector<32x64xf32>
    %36 = tpu.matmul %33, %35, %cst {dimension_numbers = #tpu.dot_dimension_numbers<[1], [0], [0], [1], [0, 0, 1, 1], [], []>} : vector<32x32xf32>, vector<32x64xf32>, vector<32x64xf32> -> vector<32x64xf32>
    %c1 = arith.constant 1 : index
    %c0_10 = arith.constant 0 : index
    %c0_11 = arith.constant 0 : index
    %37 = vector.load %arg2[%c1, %c0_10, %c0_11] : memref<3x32x64xf32, #tpu.memory_space<vmem>>, vector<1x32x64xf32>
    %38 = vector.shape_cast %37 : vector<1x32x64xf32> to vector<32x64xf32>
    %cst_12 = arith.constant dense<0.000000e+00> : vector<32x64xf32>
    %39 = tpu.matmul %33, %38, %cst_12 {dimension_numbers = #tpu.dot_dimension_numbers<[1], [0], [0], [1], [0, 0, 1, 1], [], []>} : vector<32x32xf32>, vector<32x64xf32>, vector<32x64xf32> -> vector<32x64xf32>
    %c2 = arith.constant 2 : index
    %c0_13 = arith.constant 0 : index
    %c0_14 = arith.constant 0 : index
    %40 = vector.load %arg2[%c2, %c0_13, %c0_14] : memref<3x32x64xf32, #tpu.memory_space<vmem>>, vector<1x32x64xf32>
    %41 = vector.shape_cast %40 : vector<1x32x64xf32> to vector<32x64xf32>
    %cst_15 = arith.constant dense<0.000000e+00> : vector<32x64xf32>
    %42 = tpu.matmul %33, %41, %cst_15 {dimension_numbers = #tpu.dot_dimension_numbers<[1], [0], [0], [1], [0, 0, 1, 1], [], []>} : vector<32x32xf32>, vector<32x64xf32>, vector<32x64xf32> -> vector<32x64xf32>
    %43 = vector.broadcast %1 : vector<1x64xf32> to vector<32x64xf32>
    %44 = arith.addf %39, %43 : vector<32x64xf32>
    %cst_16 = arith.constant 0.000000e+00 : f32
    %45 = vector.broadcast %cst_16 : f32 to vector<1x64xf32>
    %46 = vector.extract_strided_slice %36 {offsets = [0, 0], sizes = [31, 64], strides = [1, 1]} : vector<32x64xf32> to vector<31x64xf32>
    %47 = tpu.concatenate %45, %46 in 0 : vector<1x64xf32>, vector<31x64xf32> -> vector<32x64xf32>
    %cst_17 = arith.constant 0.000000e+00 : f32
    %48 = vector.shape_cast %30 : vector<32x1xi1> to vector<32x1xi1>
    %49 = vector.broadcast %48 : vector<32x1xi1> to vector<32x64xi1>
    %50 = vector.broadcast %cst_17 : f32 to vector<32x64xf32>
    %51 = arith.select %49, %50, %47 : vector<32x64xi1>, vector<32x64xf32>
    %52 = arith.addf %44, %51 : vector<32x64xf32>
    %cst_18 = arith.constant 0.000000e+00 : f32
    %53 = vector.broadcast %cst_18 : f32 to vector<1x64xf32>
    %54 = vector.extract_strided_slice %42 {offsets = [1, 0], sizes = [31, 64], strides = [1, 1]} : vector<32x64xf32> to vector<31x64xf32>
    %55 = tpu.concatenate %54, %53 in 0 : vector<31x64xf32>, vector<1x64xf32> -> vector<32x64xf32>
    %cst_19 = arith.constant 0.000000e+00 : f32
    %56 = vector.shape_cast %32 : vector<32x1xi1> to vector<32x1xi1>
    %57 = vector.broadcast %56 : vector<32x1xi1> to vector<32x64xi1>
    %58 = vector.broadcast %cst_19 : f32 to vector<32x64xf32>
    %59 = arith.select %57, %58, %55 : vector<32x64xi1>, vector<32x64xf32>
    %60 = arith.addf %52, %59 : vector<32x64xf32>
    %cst_20 = arith.constant dense<0.000000e+00> : vector<32xf32>
    %61 = vector.multi_reduction <add>, %60, %cst_20 [1] : vector<32x64xf32> to vector<32xf32>
    %62 = vector.shape_cast %61 : vector<32xf32> to vector<32x1xf32>
    %cst_21 = arith.constant 1.562500e-02 : f32
    %63 = vector.broadcast %cst_21 : f32 to vector<32x1xf32>
    %64 = arith.mulf %62, %63 : vector<32x1xf32>
    %65 = vector.broadcast %64 : vector<32x1xf32> to vector<32x64xf32>
    %66 = arith.subf %60, %65 : vector<32x64xf32>
    %67 = arith.mulf %66, %66 : vector<32x64xf32>
    %cst_22 = arith.constant dense<0.000000e+00> : vector<32xf32>
    %68 = vector.multi_reduction <add>, %67, %cst_22 [1] : vector<32x64xf32> to vector<32xf32>
    %69 = vector.shape_cast %68 : vector<32xf32> to vector<32x1xf32>
    %cst_23 = arith.constant 1.562500e-02 : f32
    %70 = vector.broadcast %cst_23 : f32 to vector<32x1xf32>
    %71 = arith.mulf %69, %70 : vector<32x1xf32>
    %cst_24 = arith.constant 9.99999974E-6 : f32
    %72 = vector.broadcast %cst_24 : f32 to vector<32x1xf32>
    %73 = arith.addf %71, %72 : vector<32x1xf32>
    %74 = math.rsqrt %73 : vector<32x1xf32>
    %75 = vector.broadcast %74 : vector<32x1xf32> to vector<32x64xf32>
    %76 = arith.mulf %66, %75 : vector<32x64xf32>
    %77 = vector.broadcast %2 : vector<1x64xf32> to vector<32x64xf32>
    %78 = arith.mulf %76, %77 : vector<32x64xf32>
    %79 = vector.broadcast %3 : vector<1x64xf32> to vector<32x64xf32>
    %80 = arith.addf %78, %79 : vector<32x64xf32>
    %cst_25 = arith.constant 0.000000e+00 : f32
    %81 = vector.broadcast %cst_25 : f32 to vector<32x64xf32>
    %82 = arith.maximumf %80, %81 : vector<32x64xf32>
    %c0_26 = arith.constant 0 : index
    %c0_27 = arith.constant 0 : index
    %c0_28 = arith.constant 0 : index
    %83 = vector.load %arg3[%c0_26, %c0_27, %c0_28] : memref<3x64x64xf32, #tpu.memory_space<vmem>>, vector<1x64x64xf32>
    %84 = vector.shape_cast %83 : vector<1x64x64xf32> to vector<64x64xf32>
    %cst_29 = arith.constant dense<0.000000e+00> : vector<32x64xf32>
    %85 = tpu.matmul %82, %84, %cst_29 {dimension_numbers = #tpu.dot_dimension_numbers<[1], [0], [0], [1], [0, 0, 1, 1], [], []>} : vector<32x64xf32>, vector<64x64xf32>, vector<32x64xf32> -> vector<32x64xf32>
    %c1_30 = arith.constant 1 : index
    %c0_31 = arith.constant 0 : index
    %c0_32 = arith.constant 0 : index
    %86 = vector.load %arg3[%c1_30, %c0_31, %c0_32] : memref<3x64x64xf32, #tpu.memory_space<vmem>>, vector<1x64x64xf32>
    %87 = vector.shape_cast %86 : vector<1x64x64xf32> to vector<64x64xf32>
    %cst_33 = arith.constant dense<0.000000e+00> : vector<32x64xf32>
    %88 = tpu.matmul %82, %87, %cst_33 {dimension_numbers = #tpu.dot_dimension_numbers<[1], [0], [0], [1], [0, 0, 1, 1], [], []>} : vector<32x64xf32>, vector<64x64xf32>, vector<32x64xf32> -> vector<32x64xf32>
    %c2_34 = arith.constant 2 : index
    %c0_35 = arith.constant 0 : index
    %c0_36 = arith.constant 0 : index
    %89 = vector.load %arg3[%c2_34, %c0_35, %c0_36] : memref<3x64x64xf32, #tpu.memory_space<vmem>>, vector<1x64x64xf32>
    %90 = vector.shape_cast %89 : vector<1x64x64xf32> to vector<64x64xf32>
    %cst_37 = arith.constant dense<0.000000e+00> : vector<32x64xf32>
    %91 = tpu.matmul %82, %90, %cst_37 {dimension_numbers = #tpu.dot_dimension_numbers<[1], [0], [0], [1], [0, 0, 1, 1], [], []>} : vector<32x64xf32>, vector<64x64xf32>, vector<32x64xf32> -> vector<32x64xf32>
    %92 = vector.broadcast %4 : vector<1x64xf32> to vector<32x64xf32>
    %93 = arith.addf %88, %92 : vector<32x64xf32>
    %cst_38 = arith.constant 0.000000e+00 : f32
    %94 = vector.broadcast %cst_38 : f32 to vector<1x64xf32>
    %95 = vector.extract_strided_slice %85 {offsets = [0, 0], sizes = [31, 64], strides = [1, 1]} : vector<32x64xf32> to vector<31x64xf32>
    %96 = tpu.concatenate %94, %95 in 0 : vector<1x64xf32>, vector<31x64xf32> -> vector<32x64xf32>
    %cst_39 = arith.constant 0.000000e+00 : f32
    %97 = vector.shape_cast %30 : vector<32x1xi1> to vector<32x1xi1>
    %98 = vector.broadcast %97 : vector<32x1xi1> to vector<32x64xi1>
    %99 = vector.broadcast %cst_39 : f32 to vector<32x64xf32>
    %100 = arith.select %98, %99, %96 : vector<32x64xi1>, vector<32x64xf32>
    %101 = arith.addf %93, %100 : vector<32x64xf32>
    %cst_40 = arith.constant 0.000000e+00 : f32
    %102 = vector.broadcast %cst_40 : f32 to vector<1x64xf32>
    %103 = vector.extract_strided_slice %91 {offsets = [1, 0], sizes = [31, 64], strides = [1, 1]} : vector<32x64xf32> to vector<31x64xf32>
    %104 = tpu.concatenate %103, %102 in 0 : vector<31x64xf32>, vector<1x64xf32> -> vector<32x64xf32>
    %cst_41 = arith.constant 0.000000e+00 : f32
    %105 = vector.shape_cast %32 : vector<32x1xi1> to vector<32x1xi1>
    %106 = vector.broadcast %105 : vector<32x1xi1> to vector<32x64xi1>
    %107 = vector.broadcast %cst_41 : f32 to vector<32x64xf32>
    %108 = arith.select %106, %107, %104 : vector<32x64xi1>, vector<32x64xf32>
    %109 = arith.addf %101, %108 : vector<32x64xf32>
    %cst_42 = arith.constant dense<0.000000e+00> : vector<32xf32>
    %110 = vector.multi_reduction <add>, %109, %cst_42 [1] : vector<32x64xf32> to vector<32xf32>
    %111 = vector.shape_cast %110 : vector<32xf32> to vector<32x1xf32>
    %cst_43 = arith.constant 1.562500e-02 : f32
    %112 = vector.broadcast %cst_43 : f32 to vector<32x1xf32>
    %113 = arith.mulf %111, %112 : vector<32x1xf32>
    %114 = vector.broadcast %113 : vector<32x1xf32> to vector<32x64xf32>
    %115 = arith.subf %109, %114 : vector<32x64xf32>
    %116 = arith.mulf %115, %115 : vector<32x64xf32>
    %cst_44 = arith.constant dense<0.000000e+00> : vector<32xf32>
    %117 = vector.multi_reduction <add>, %116, %cst_44 [1] : vector<32x64xf32> to vector<32xf32>
    %118 = vector.shape_cast %117 : vector<32xf32> to vector<32x1xf32>
    %cst_45 = arith.constant 1.562500e-02 : f32
    %119 = vector.broadcast %cst_45 : f32 to vector<32x1xf32>
    %120 = arith.mulf %118, %119 : vector<32x1xf32>
    %cst_46 = arith.constant 9.99999974E-6 : f32
    %121 = vector.broadcast %cst_46 : f32 to vector<32x1xf32>
    %122 = arith.addf %120, %121 : vector<32x1xf32>
    %123 = math.rsqrt %122 : vector<32x1xf32>
    %124 = vector.broadcast %123 : vector<32x1xf32> to vector<32x64xf32>
    %125 = arith.mulf %115, %124 : vector<32x64xf32>
    %126 = vector.broadcast %5 : vector<1x64xf32> to vector<32x64xf32>
    %127 = arith.mulf %125, %126 : vector<32x64xf32>
    %128 = vector.broadcast %6 : vector<1x64xf32> to vector<32x64xf32>
    %129 = arith.addf %127, %128 : vector<32x64xf32>
    %cst_47 = arith.constant 0.000000e+00 : f32
    %130 = vector.broadcast %cst_47 : f32 to vector<32x64xf32>
    %131 = arith.maximumf %129, %130 : vector<32x64xf32>
    %cst_48 = arith.constant dense<0.000000e+00> : vector<1x32xf32>
    %132 = tpu.matmul %7, %131, %cst_48 {dimension_numbers = #tpu.dot_dimension_numbers<[1], [1], [0], [0], [0, 0, 1, 0], [], []>} : vector<1x64xf32>, vector<32x64xf32>, vector<1x32xf32> -> vector<1x32xf32>
    %133 = vector.broadcast %8 : vector<1x1xf32> to vector<1x32xf32>
    %134 = arith.addf %132, %133 : vector<1x32xf32>
    %c0_49 = arith.constant 0 : index
    %c0_50 = arith.constant 0 : index
    %c0_51 = arith.constant 0 : index
    %135 = vector.load %arg5[%c0_49, %c0_50, %c0_51] : memref<1x1x32xf32, #tpu.memory_space<vmem>>, vector<1x1x32xf32>
    %136 = vector.shape_cast %135 : vector<1x1x32xf32> to vector<1x32xf32>
    %137 = vector.shape_cast %134 : vector<1x32xf32> to vector<1x1x32xf32>
    tpu.vector_store %arg5[%c0_49, %c0_50, %c0_51], %137 {strides = array<i32>} : memref<1x1x32xf32, #tpu.memory_space<vmem>>, vector<1x1x32xf32>,
    return
  }
  func.func @transform_0(%arg0: i32) -> (i32, i32) {
    %c0_i32 = arith.constant 0 : i32
    %c0_i32_0 = arith.constant 0 : i32
    return %arg0, %c0_i32 : i32, i32
  }
  func.func @transform_1(%arg0: i32) -> (i32, i32, i32) {
    %c0_i32 = arith.constant 0 : i32
    %c0_i32_0 = arith.constant 0 : i32
    %c0_i32_1 = arith.constant 0 : i32
    %c0_i32_2 = arith.constant 0 : i32
    return %c0_i32, %c0_i32_0, %c0_i32_1 : i32, i32, i32
  }
  func.func @transform_2(%arg0: i32) -> (i32, i32, i32) {
    %c0_i32 = arith.constant 0 : i32
    %c0_i32_0 = arith.constant 0 : i32
    %c0_i32_1 = arith.constant 0 : i32
    %c0_i32_2 = arith.constant 0 : i32
    return %c0_i32, %c0_i32_0, %c0_i32_1 : i32, i32, i32
  }
  func.func @transform_3(%arg0: i32) -> (i32, i32) {
    %c0_i32 = arith.constant 0 : i32
    %c0_i32_0 = arith.constant 0 : i32
    %c0_i32_1 = arith.constant 0 : i32
    return %c0_i32, %c0_i32_0 : i32, i32
  }
  func.func @transform_4(%arg0: i32) -> (i32, i32, i32) {
    %c0_i32 = arith.constant 0 : i32
    %c0_i32_0 = arith.constant 0 : i32
    %c0_i32_1 = arith.constant 0 : i32
    return %arg0, %c0_i32, %c0_i32_0 : i32, i32, i32
  }
}

</mosaic_0001>

<llo_original>
// kernel: tpu_custom_call.1
$region0: #{tpu_custom_call.1}
  #allocation0 [shape = 'u32[]', space=smem, size = 0x4, offset = 0x4, fixed_abs, tag = 'smem constant byte address 0x4 - core index']
  #allocation1 [shape = 'u32[72,128]{1,0:T(1,128)}', space=vmem, size = 0x9000, scoped, tag = 'internal scratch']
  %s0 = inlined_call_operand.hbm [shape: f32[32,32], index: 0, kind: input, shape index: {}]
  %s1 = inlined_call_operand.hbm [shape: f32[3,32,64], index: 1, kind: input, shape index: {}]
  %s2 = inlined_call_operand.hbm [shape: f32[3,64,64], index: 2, kind: input, shape index: {}]
  %s3 = inlined_call_operand.hbm [shape: f32[8,64], index: 3, kind: input, shape index: {}]
  %s4 = inlined_call_operand.hbm [shape: f32[1,1,32], index: 4, kind: output, shape index: {}]
  %s5 = sld [smem:[#allocation0]]
  $region42: #{tpu_custom_call.1} parent=0
    _
  %s7 = ssub.s32 1, %s5
  %s8 = scalar_select 0, %s7, %s5
  $region1: #{tpu_custom_call.1} parent=0
    #allocation2 [shape = 'u8[16384]{0}', space=vmem, size = 0x4000, scoped, tag = 'input window, operand 0, single buffered']
    #allocation3 [shape = 's32[1]{0}', space=sflag, size = 0x4, scoped, tag = 'scoped memory for tpu_custom_call.1']
    #allocation4 [shape = 's32[1]{0}', space=sflag, size = 0x4, scoped, tag = 'scoped memory for tpu_custom_call.1']
    #allocation5 [shape = 'u8[49152]{0}', space=vmem, size = 0xc000, scoped, tag = 'input window, operand 1, single buffered']
    #allocation6 [shape = 's32[1]{0}', space=sflag, size = 0x4, scoped, tag = 'scoped memory for tpu_custom_call.1']
    #allocation7 [shape = 'u8[98304]{0}', space=vmem, size = 0x18000, scoped, tag = 'input window, operand 2, single buffered']
    #allocation8 [shape = 'u8[4096]{0}', space=vmem, size = 0x1000, scoped, tag = 'input window, operand 3, single buffered']
    #allocation9 [shape = 's32[1]{0}', space=sflag, size = 0x4, scoped, tag = 'scoped memory for tpu_custom_call.1']
    #allocation10 [shape = 'u8[512]{0}', space=vmem, size = 0x400, scoped, tag = 'output window, operand 0, single buffered']
    %9 = vsyncpa [#allocation3], 0
    %10 = vsyncpa [#allocation6], 0
    %11 = vsyncpa [#allocation9], 0
    %12 = vsyncpa [#allocation4], 0
    // Predicated region
    $region2: #{tpu_custom_call.1} parent=1 // pred_check
      _
    $region3: #{tpu_custom_call.1} parent=1 // pred_check_branch
      %14 = sbr.rel (0) target = $region5
    $region4: #{tpu_custom_call.1} parent=1 // pred_region
      %16 = vsyncadd [#allocation3], 0
      %s17 = sshll.u32 %s0, 4
      %s18 = int_to_ptr.hbm [resolvable:$true] %s17
      %s19 = sshll.u32 [#allocation2], 4
      %s20 = int_to_ptr.vmem [resolvable:$true] %s19
      %25 = dma.hbm_to_vmem [thread:$0]  %s18, 512, %s20, [#allocation3], 128, 128, 8
    $region5: #{tpu_custom_call.1} parent=1 // pred_fallthru
      _
    // Predicated region
    $region6: #{tpu_custom_call.1} parent=1 // pred_check
      _
    $region7: #{tpu_custom_call.1} parent=1 // pred_check_branch
      %27 = sbr.rel (0) target = $region9
    $region8: #{tpu_custom_call.1} parent=1 // pred_region
      %29 = vsyncadd [#allocation6], 0
      %s30 = sshll.u32 %s1, 4
      %s31 = int_to_ptr.hbm [resolvable:$true] %s30
      %s32 = sshll.u32 [#allocation5], 4
      %s33 = int_to_ptr.vmem [resolvable:$true] %s32
      %38 = dma.hbm_to_vmem [thread:$0]  %s31, 1536, %s33, [#allocation6], 128, 128, 8
    $region9: #{tpu_custom_call.1} parent=1 // pred_fallthru
      _
    // Predicated region
    $region10: #{tpu_custom_call.1} parent=1 // pred_check
      _
    $region11: #{tpu_custom_call.1} parent=1 // pred_check_branch
      %40 = sbr.rel (0) target = $region13
    $region12: #{tpu_custom_call.1} parent=1 // pred_region
      %42 = vsyncadd [#allocation6], 0
      %s43 = sshll.u32 %s2, 4
      %s44 = int_to_ptr.hbm [resolvable:$true] %s43
      %s45 = sshll.u32 [#allocation7], 4
      %s46 = int_to_ptr.vmem [resolvable:$true] %s45
      %51 = dma.hbm_to_vmem [thread:$0]  %s44, 3072, %s46, [#allocation6], 128, 128, 8
    $region13: #{tpu_custom_call.1} parent=1 // pred_fallthru
      _
    // Predicated region
    $region14: #{tpu_custom_call.1} parent=1 // pred_check
      _
    $region15: #{tpu_custom_call.1} parent=1 // pred_check_branch
      %53 = sbr.rel (0) target = $region17
    $region16: #{tpu_custom_call.1} parent=1 // pred_region
      %55 = vsyncadd [#allocation9], 0
      %s57 = sshll.u32 %s3, 4
      %s58 = int_to_ptr.hbm [resolvable:$true] %s57
      %s59 = sshll.u32 [#allocation8], 4
      %s60 = int_to_ptr.vmem [resolvable:$true] %s59
      %62 = dma.hbm_to_vmem [thread:$0]  %s58, 128, %s60, [#allocation9]
    $region17: #{tpu_custom_call.1} parent=1 // pred_fallthru
      _
    // Predicated region
    $region18: #{tpu_custom_call.1} parent=1 // pred_check
      _
    $region19: #{tpu_custom_call.1} parent=1 // pred_check_branch
      %64 = sbr.rel (0) target = $region21
    $region20: #{tpu_custom_call.1} parent=1 // pred_region
      %66 = dma.done [#allocation3], 512
    $region21: #{tpu_custom_call.1} parent=1 // pred_fallthru
      _
    // Predicated region
    $region22: #{tpu_custom_call.1} parent=1 // pred_check
      _
    $region23: #{tpu_custom_call.1} parent=1 // pred_check_branch
      %68 = sbr.rel (0) target = $region25
    $region24: #{tpu_custom_call.1} parent=1 // pred_region
      %70 = dma.done [#allocation6], 1536
    $region25: #{tpu_custom_call.1} parent=1 // pred_fallthru
      _
    // Predicated region
    $region26: #{tpu_custom_call.1} parent=1 // pred_check
      _
    $region27: #{tpu_custom_call.1} parent=1 // pred_check_branch
      %72 = sbr.rel (0) target = $region29
    $region28: #{tpu_custom_call.1} parent=1 // pred_region
      %74 = dma.done [#allocation6], 3072
    $region29: #{tpu_custom_call.1} parent=1 // pred_fallthru
      _
    // Predicated region
    $region30: #{tpu_custom_call.1} parent=1 // pred_check
      _
    $region31: #{tpu_custom_call.1} parent=1 // pred_check_branch
      %76 = sbr.rel (0) target = $region33
    $region32: #{tpu_custom_call.1} parent=1 // pred_region
      %78 = dma.done [#allocation9], 128
    $region33: #{tpu_custom_call.1} parent=1 // pred_fallthru
      _
    %v79 = vld [vmem:[#allocation8] sm:$0xff]
    %s80 = smul.u32 0, 32
    %v81 = vlaneseq
    %v82 = vshrl.u32 %v81, 7
    %v83 = vadd.s32 %v82, 8
    %v84 = vadd.s32 %v82, 16
    %v85 = vadd.s32 %v82, 24
    %v86 = vstv %s80
    %v87 = vadd.s32 %v86, %v82
    %v88 = vadd.s32 %v86, %v83
    %v89 = vadd.s32 %v86, %v84
    %v90 = vadd.s32 %v86, %v85
    %vm91 = vcmp.lt.s32.totalorder %v87, 0
    %v92 = vsub.s32 0, %v87
    %v93 = vsel %vm91, %v92, %v87
    %v94 = vshrl.u32 %v93, 4
    %v95 = vand.u32 %v93, 15
    %v96 = vsub.s32 0, %v95
    %v97 = vsel %vm91, %v96, %v95
    %vm98 = vcmp.lt.s32.totalorder %v88, 0
    %v99 = vsub.s32 0, %v88
    %v100 = vsel %vm98, %v99, %v88
    %v101 = vshrl.u32 %v100, 4
    %v102 = vand.u32 %v100, 15
    %v103 = vsub.s32 0, %v102
    %v104 = vsel %vm98, %v103, %v102
    %vm105 = vcmp.lt.s32.totalorder %v89, 0
    %v106 = vsub.s32 0, %v89
    %v107 = vsel %vm105, %v106, %v89
    %v108 = vshrl.u32 %v107, 4
    %v109 = vand.u32 %v107, 15
    %v110 = vsub.s32 0, %v109
    %v111 = vsel %vm105, %v110, %v109
    %vm112 = vcmp.lt.s32.totalorder %v90, 0
    %v113 = vsub.s32 0, %v90
    %v114 = vsel %vm112, %v113, %v90
    %v115 = vshrl.u32 %v114, 4
    %v116 = vand.u32 %v114, 15
    %v117 = vsub.s32 0, %v116
    %v118 = vsel %vm112, %v117, %v116
    %vm119 = vcmp.ne.s32.totalorder %v97, 0
    %vm120 = vcmp.ne.s32.totalorder %v104, 0
    %vm121 = vcmp.ne.s32.totalorder %v111, 0
    %vm122 = vcmp.ne.s32.totalorder %v118, 0
    %vm123 = vcmp.lt.s32.totalorder %v97, 0
    %vm124 = vcmp.lt.s32.totalorder %v104, 0
    %vm125 = vcmp.lt.s32.totalorder %v111, 0
    %vm126 = vcmp.lt.s32.totalorder %v118, 0
    %vm127 = vmand %vm123, %vm119
    %vm128 = vmand %vm124, %vm120
    %vm129 = vmand %vm125, %vm121
    %vm130 = vmand %vm126, %vm122
    %v131 = vadd.s32 %v97, 16
    %v132 = vadd.s32 %v104, 16
    %v133 = vadd.s32 %v111, 16
    %v134 = vadd.s32 %v118, 16
    %v135 = vsel %vm127, %v131, %v97
    %v136 = vsel %vm128, %v132, %v104
    %v137 = vsel %vm129, %v133, %v111
    %v138 = vsel %vm130, %v134, %v118
    %vm139 = vcmp.eq.s32.totalorder %v135, 0
    %vm140 = vcmp.eq.s32.totalorder %v136, 0
    %vm141 = vcmp.eq.s32.totalorder %v137, 0
    %vm142 = vcmp.eq.s32.totalorder %v138, 0
    %vm143 = vcmp.eq.s32.totalorder %v135, 15
    %vm144 = vcmp.eq.s32.totalorder %v136, 15
    %vm145 = vcmp.eq.s32.totalorder %v137, 15
    %vm146 = vcmp.eq.s32.totalorder %v138, 15
    %v147 = vld [vmem:[#allocation2] sm:$0xff]
    %v148 = vld [vmem:[#allocation2 + $0x8] sm:$0xff]
    %v149 = vld [vmem:[#allocation2 + $0x10] sm:$0xff]
    %v150 = vld [vmem:[#allocation2 + $0x18] sm:$0xff]
    %v151 = vld [vmem:[#allocation5] sm:$0xff]
    %v152 = vld [vmem:[#allocation5 + $0x8] sm:$0xff]
    %v153 = vld [vmem:[#allocation5 + $0x10] sm:$0xff]
    %v154 = vld [vmem:[#allocation5 + $0x18] sm:$0xff]
    %vm155 = vcmask 261120
    %v157 = vsel %vm155, %v147, 0
    %v160 = vsel %vm155, %v148, 0
    %v163 = vsel %vm155, %v149, 0
    %v166 = vsel %vm155, %v150, 0
    %168 = vmatpush.msra.mxu0 0.0
    %169 = vmatpush.msra.mxu0 0.0
    %170 = vmatpush.msra.mxu0 0.0
    %171 = vmatpush.msra.mxu0 0.0
    %172 = vmatpush.msra.mxu0 0.0
    %173 = vmatpush.msra.mxu0 0.0
    %174 = vmatpush.msra.mxu0 0.0
    %175 = vmatpush.msra.mxu0 0.0
    %176 = vmatpush.msra.mxu0 0.0
    %177 = vmatpush.msra.mxu0 0.0
    %178 = vmatpush.msra.mxu0 0.0
    %179 = vmatpush.msra.mxu0 0.0
    %180 = vmatpush.msra.mxu0 %v154
    %181 = vmatpush.msra.mxu0 %v153
    %182 = vmatpush.msra.mxu0 %v152
    %183 = vmatpush.msra.mxu0 %v151
    %184 = vmatmul.f32.gmra.mxu0 %v157
    %v185 = vpop.f32.mrf.mxu0
    %v186 = vadd.f32 0.0, %v185
    %187 = vmatmul.f32.gmra.mxu0 %v160
    %v188 = vpop.f32.mrf.mxu0
    %v189 = vadd.f32 0.0, %v188
    %190 = vmatmul.f32.gmra.mxu0 %v163
    %v191 = vpop.f32.mrf.mxu0
    %v192 = vadd.f32 0.0, %v191
    %193 = vmatmul.f32.gmra.mxu0 %v166
    %v194 = vpop.f32.mrf.mxu0
    %v195 = vadd.f32 0.0, %v194
    %196 = vdwg.mxu0
    %s197 = scalar_lea.vmem [#allocation5], 32
    %v198 = vld [vmem:[%s197] sm:$0xff]
    %v199 = vld [vmem:[%s197 + $0x8] sm:$0xff]
    %v200 = vld [vmem:[%s197 + $0x10] sm:$0xff]
    %v201 = vld [vmem:[%s197 + $0x18] sm:$0xff]
    %s202 = scalar_lea.vmem [#allocation5], 64
    %v203 = vld [vmem:[%s202] sm:$0xff]
    %v204 = vld [vmem:[%s202 + $0x8] sm:$0xff]
    %v205 = vld [vmem:[%s202 + $0x10] sm:$0xff]
    %v206 = vld [vmem:[%s202 + $0x18] sm:$0xff]
    %207 = vmatpush.msra.mxu0 0.0
    %208 = vmatpush.msra.mxu0 0.0
    %209 = vmatpush.msra.mxu0 0.0
    %210 = vmatpush.msra.mxu0 0.0
    %211 = vmatpush.msra.mxu0 0.0
    %212 = vmatpush.msra.mxu0 0.0
    %213 = vmatpush.msra.mxu0 0.0
    %214 = vmatpush.msra.mxu0 0.0
    %215 = vmatpush.msra.mxu0 0.0
    %216 = vmatpush.msra.mxu0 0.0
    %217 = vmatpush.msra.mxu0 0.0
    %218 = vmatpush.msra.mxu0 0.0
    %219 = vmatpush.msra.mxu0 %v206
    %220 = vmatpush.msra.mxu0 %v205
    %221 = vmatpush.msra.mxu0 %v204
    %222 = vmatpush.msra.mxu0 %v203
    %223 = vmatmul.f32.gmra.mxu0 %v157
    %v224 = vpop.f32.mrf.mxu0
    %v225 = vadd.f32 0.0, %v224
    %226 = vmatmul.f32.gmra.mxu0 %v160
    %v227 = vpop.f32.mrf.mxu0
    %v228 = vadd.f32 0.0, %v227
    %229 = vmatmul.f32.gmra.mxu0 %v163
    %v230 = vpop.f32.mrf.mxu0
    %v231 = vadd.f32 0.0, %v230
    %232 = vmatmul.f32.gmra.mxu0 %v166
    %v233 = vpop.f32.mrf.mxu0
    %v234 = vadd.f32 0.0, %v233
    %235 = vdwg.mxu0
    %v236 = vperm.slane %v79, 0
    %237 = vmatpush.msra.mxu0 0.0
    %238 = vmatpush.msra.mxu0 0.0
    %239 = vmatpush.msra.mxu0 0.0
    %240 = vmatpush.msra.mxu0 0.0
    %241 = vmatpush.msra.mxu0 0.0
    %242 = vmatpush.msra.mxu0 0.0
    %243 = vmatpush.msra.mxu0 0.0
    %244 = vmatpush.msra.mxu0 0.0
    %245 = vmatpush.msra.mxu0 0.0
    %246 = vmatpush.msra.mxu0 0.0
    %247 = vmatpush.msra.mxu0 0.0
    %248 = vmatpush.msra.mxu0 0.0
    %249 = vmatpush.msra.mxu0 %v201
    %250 = vmatpush.msra.mxu0 %v200
    %251 = vmatpush.msra.mxu0 %v199
    %252 = vmatpush.msra.mxu0 %v198
    %253 = vmatmul.f32.gmra.mxu0 %v157
    %v254 = vpop.f32.mrf.mxu0
    %v255 = vadd.f32 %v236, %v254
    %256 = vmatmul.f32.gmra.mxu0 %v160
    %v257 = vpop.f32.mrf.mxu0
    %v258 = vadd.f32 %v236, %v257
    %259 = vmatmul.f32.gmra.mxu0 %v163
    %v260 = vpop.f32.mrf.mxu0
    %v261 = vadd.f32 %v236, %v260
    %262 = vmatmul.f32.gmra.mxu0 %v166
    %v263 = vpop.f32.mrf.mxu0
    %v264 = vadd.f32 %v236, %v263
    %265 = vdwg.mxu0
    %vm270 = vcmask 1040384
    %v271 = vrot.slane %v186, 7
    %v272 = vrot.slane %v189, 7
    %v273 = vsel %vm270, %v271, %v272
    %v274 = vrot.slane %v192, 7
    %v275 = vsel %vm270, %v272, %v274
    %v276 = vrot.slane %v195, 7
    %v277 = vsel %vm270, %v274, %v276
    %v282 = vsel %vm270, 0.0, %v271
    %v283 = vsel %vm139, 1, 0
    %v284 = vsel %vm140, 1, 0
    %v285 = vsel %vm141, 1, 0
    %v286 = vsel %vm142, 1, 0
    %vm287 = vcmp.eq.s32.totalorder %v283, 1
    %vm288 = vcmp.eq.s32.totalorder %v284, 1
    %vm289 = vcmp.eq.s32.totalorder %v285, 1
    %vm290 = vcmp.eq.s32.totalorder %v286, 1
    %v291 = vsel %vm287, 0.0, %v282
    %v292 = vsel %vm288, 0.0, %v273
    %v293 = vsel %vm289, 0.0, %v275
    %v294 = vsel %vm290, 0.0, %v277
    %v295 = vadd.f32 %v255, %v291
    %v296 = vadd.f32 %v258, %v292
    %v297 = vadd.f32 %v261, %v293
    %v298 = vadd.f32 %v264, %v294
    %vm303 = vcmask 1046528
    %v304 = vrot.slane %v225, 1
    %v305 = vrot.slane %v228, 1
    %v306 = vsel %vm303, %v304, %v305
    %v307 = vrot.slane %v231, 1
    %v308 = vsel %vm303, %v305, %v307
    %v309 = vrot.slane %v234, 1
    %v310 = vsel %vm303, %v307, %v309
    %v315 = vsel %vm303, %v309, 0.0
    %v316 = vsel %vm143, 1, 0
    %v317 = vsel %vm144, 1, 0
    %v318 = vsel %vm145, 1, 0
    %v319 = vsel %vm146, 1, 0
    %vm320 = vcmp.eq.s32.totalorder %v316, 1
    %vm321 = vcmp.eq.s32.totalorder %v317, 1
    %vm322 = vcmp.eq.s32.totalorder %v318, 1
    %vm323 = vcmp.eq.s32.totalorder %v319, 1
    %v324 = vsel %vm320, 0.0, %v306
    %v325 = vsel %vm321, 0.0, %v308
    %v326 = vsel %vm322, 0.0, %v310
    %v327 = vsel %vm323, 0.0, %v315
    %v328 = vadd.f32 %v295, %v324
    %v329 = vadd.f32 %v296, %v325
    %v330 = vadd.f32 %v297, %v326
    %v331 = vadd.f32 %v298, %v327
    %vm332 = vcmask 523264
    %v333 = vsel %vm332, %v328, 0.0
    %334 = vadd.xlane.f32.xlu0 %v333
    %v335 = vpop.xlane.xlu0 %334
    %v336 = vsel %vm332, %v329, 0.0
    %337 = vadd.xlane.f32.xlu0 %v336
    %v338 = vpop.xlane.xlu0 %337
    %v339 = vsel %vm332, %v330, 0.0
    %340 = vadd.xlane.f32.xlu0 %v339
    %v341 = vpop.xlane.xlu0 %340
    %v342 = vsel %vm332, %v331, 0.0
    %343 = vadd.xlane.f32.xlu0 %v342
    %v344 = vpop.xlane.xlu0 %343
    %v345 = vmul.f32 %v335, 0.015625
    %v346 = vmul.f32 %v338, 0.015625
    %v347 = vmul.f32 %v341, 0.015625
    %v348 = vmul.f32 %v344, 0.015625
    %v349 = vsub.f32 %v328, %v345
    %v350 = vsub.f32 %v329, %v346
    %v351 = vsub.f32 %v330, %v347
    %v352 = vsub.f32 %v331, %v348
    %v353 = vmul.f32 %v349, %v349
    %v354 = vmul.f32 %v350, %v350
    %v355 = vmul.f32 %v351, %v351
    %v356 = vmul.f32 %v352, %v352
    %v357 = vsel %vm332, %v353, 0.0
    %358 = vadd.xlane.f32.xlu0 %v357
    %v359 = vpop.xlane.xlu0 %358
    %v360 = vsel %vm332, %v354, 0.0
    %361 = vadd.xlane.f32.xlu0 %v360
    %v362 = vpop.xlane.xlu0 %361
    %v363 = vsel %vm332, %v355, 0.0
    %364 = vadd.xlane.f32.xlu0 %v363
    %v365 = vpop.xlane.xlu0 %364
    %v366 = vsel %vm332, %v356, 0.0
    %367 = vadd.xlane.f32.xlu0 %v366
    %v368 = vpop.xlane.xlu0 %367
    %v369 = vmul.f32 %v359, 0.015625
    %v370 = vmul.f32 %v362, 0.015625
    %v371 = vmul.f32 %v365, 0.015625
    %v372 = vmul.f32 %v368, 0.015625
    %v373 = vadd.f32 %v369, 1e-05
    %v374 = vadd.f32 %v370, 1e-05
    %v375 = vadd.f32 %v371, 1e-05
    %v376 = vadd.f32 %v372, 1e-05
    %v377 = vrsqrt.pop %v373
    %v378 = vmul.f32 %v377, %v373
    %v379 = vmul.f32 %v378, %v377
    %v380 = vmul.f32 0.5, %v379
    %v381 = vsub.f32 1.5, %v380
    %v382 = vmul.f32 %v377, %v381
    %vm383 = vweird.f32 %v373
    %vm384 = vweird.f32 %v377
    %vm385 = vmor %vm383, %vm384
    %v386 = vsel %vm385, %v377, %v382
    %v387 = vrsqrt.pop %v374
    %v388 = vmul.f32 %v387, %v374
    %v389 = vmul.f32 %v388, %v387
    %v390 = vmul.f32 0.5, %v389
    %v391 = vsub.f32 1.5, %v390
    %v392 = vmul.f32 %v387, %v391
    %vm393 = vweird.f32 %v374
    %vm394 = vweird.f32 %v387
    %vm395 = vmor %vm393, %vm394
    %v396 = vsel %vm395, %v387, %v392
    %v397 = vrsqrt.pop %v375
    %v398 = vmul.f32 %v397, %v375
    %v399 = vmul.f32 %v398, %v397
    %v400 = vmul.f32 0.5, %v399
    %v401 = vsub.f32 1.5, %v400
    %v402 = vmul.f32 %v397, %v401
    %vm403 = vweird.f32 %v375
    %vm404 = vweird.f32 %v397
    %vm405 = vmor %vm403, %vm404
    %v406 = vsel %vm405, %v397, %v402
    %v407 = vrsqrt.pop %v376
    %v408 = vmul.f32 %v407, %v376
    %v409 = vmul.f32 %v408, %v407
    %v410 = vmul.f32 0.5, %v409
    %v411 = vsub.f32 1.5, %v410
    %v412 = vmul.f32 %v407, %v411
    %vm413 = vweird.f32 %v376
    %vm414 = vweird.f32 %v407
    %vm415 = vmor %vm413, %vm414
    %v416 = vsel %vm415, %v407, %v412
    %v417 = vmul.f32 %v349, %v386
    %v418 = vmul.f32 %v350, %v396
    %v419 = vmul.f32 %v351, %v406
    %v420 = vmul.f32 %v352, %v416
    %v421 = vperm.slane %v79, 1
    %v422 = vmul.f32 %v417, %v421
    %v423 = vmul.f32 %v418, %v421
    %v424 = vmul.f32 %v419, %v421
    %v425 = vmul.f32 %v420, %v421
    %v426 = vperm.slane %v79, 2
    %v427 = vadd.f32 %v422, %v426
    %v428 = vadd.f32 %v423, %v426
    %v429 = vadd.f32 %v424, %v426
    %v430 = vadd.f32 %v425, %v426
    %v431 = vmax.f32 %v427, 0.0
    %v432 = vmax.f32 %v428, 0.0
    %v433 = vmax.f32 %v429, 0.0
    %v434 = vmax.f32 %v430, 0.0
    %v435 = vld [vmem:[#allocation7] sm:$0xff]
    %v436 = vld [vmem:[#allocation7 + $0x8] sm:$0xff]
    %v437 = vld [vmem:[#allocation7 + $0x10] sm:$0xff]
    %v438 = vld [vmem:[#allocation7 + $0x18] sm:$0xff]
    %v439 = vld [vmem:[#allocation7 + $0x20] sm:$0xff]
    %v440 = vld [vmem:[#allocation7 + $0x28] sm:$0xff]
    %v441 = vld [vmem:[#allocation7 + $0x30] sm:$0xff]
    %v442 = vld [vmem:[#allocation7 + $0x38] sm:$0xff]
    %v444 = vsel %vm332, %v431, 0
    %v447 = vsel %vm332, %v432, 0
    %v450 = vsel %vm332, %v433, 0
    %v453 = vsel %vm332, %v434, 0
    %455 = vmatpush.msra.mxu0 0.0
    %456 = vmatpush.msra.mxu0 0.0
    %457 = vmatpush.msra.mxu0 0.0
    %458 = vmatpush.msra.mxu0 0.0
    %459 = vmatpush.msra.mxu0 0.0
    %460 = vmatpush.msra.mxu0 0.0
    %461 = vmatpush.msra.mxu0 0.0
    %462 = vmatpush.msra.mxu0 0.0
    %463 = vmatpush.msra.mxu0 %v442
    %464 = vmatpush.msra.mxu0 %v441
    %465 = vmatpush.msra.mxu0 %v440
    %466 = vmatpush.msra.mxu0 %v439
    %467 = vmatpush.msra.mxu0 %v438
    %468 = vmatpush.msra.mxu0 %v437
    %469 = vmatpush.msra.mxu0 %v436
    %470 = vmatpush.msra.mxu0 %v435
    %471 = vmatmul.f32.gmra.mxu0 %v444
    %v472 = vpop.f32.mrf.mxu0
    %v473 = vadd.f32 0.0, %v472
    %474 = vmatmul.f32.gmra.mxu0 %v447
    %v475 = vpop.f32.mrf.mxu0
    %v476 = vadd.f32 0.0, %v475
    %477 = vmatmul.f32.gmra.mxu0 %v450
    %v478 = vpop.f32.mrf.mxu0
    %v479 = vadd.f32 0.0, %v478
    %480 = vmatmul.f32.gmra.mxu0 %v453
    %v481 = vpop.f32.mrf.mxu0
    %v482 = vadd.f32 0.0, %v481
    %483 = vdwg.mxu0
    %s484 = scalar_lea.vmem [#allocation7], 64
    %v485 = vld [vmem:[%s484] sm:$0xff]
    %v486 = vld [vmem:[%s484 + $0x8] sm:$0xff]
    %v487 = vld [vmem:[%s484 + $0x10] sm:$0xff]
    %v488 = vld [vmem:[%s484 + $0x18] sm:$0xff]
    %v489 = vld [vmem:[%s484 + $0x20] sm:$0xff]
    %v490 = vld [vmem:[%s484 + $0x28] sm:$0xff]
    %v491 = vld [vmem:[%s484 + $0x30] sm:$0xff]
    %v492 = vld [vmem:[%s484 + $0x38] sm:$0xff]
    %s493 = scalar_lea.vmem [#allocation7], 128
    %v494 = vld [vmem:[%s493] sm:$0xff]
    %v495 = vld [vmem:[%s493 + $0x8] sm:$0xff]
    %v496 = vld [vmem:[%s493 + $0x10] sm:$0xff]
    %v497 = vld [vmem:[%s493 + $0x18] sm:$0xff]
    %v498 = vld [vmem:[%s493 + $0x20] sm:$0xff]
    %v499 = vld [vmem:[%s493 + $0x28] sm:$0xff]
    %v500 = vld [vmem:[%s493 + $0x30] sm:$0xff]
    %v501 = vld [vmem:[%s493 + $0x38] sm:$0xff]
    %502 = vmatpush.msra.mxu0 0.0
    %503 = vmatpush.msra.mxu0 0.0
    %504 = vmatpush.msra.mxu0 0.0
    %505 = vmatpush.msra.mxu0 0.0
    %506 = vmatpush.msra.mxu0 0.0
    %507 = vmatpush.msra.mxu0 0.0
    %508 = vmatpush.msra.mxu0 0.0
    %509 = vmatpush.msra.mxu0 0.0
    %510 = vmatpush.msra.mxu0 %v501
    %511 = vmatpush.msra.mxu0 %v500
    %512 = vmatpush.msra.mxu0 %v499
    %513 = vmatpush.msra.mxu0 %v498
    %514 = vmatpush.msra.mxu0 %v497
    %515 = vmatpush.msra.mxu0 %v496
    %516 = vmatpush.msra.mxu0 %v495
    %517 = vmatpush.msra.mxu0 %v494
    %518 = vmatmul.f32.gmra.mxu0 %v444
    %v519 = vpop.f32.mrf.mxu0
    %v520 = vadd.f32 0.0, %v519
    %521 = vmatmul.f32.gmra.mxu0 %v447
    %v522 = vpop.f32.mrf.mxu0
    %v523 = vadd.f32 0.0, %v522
    %524 = vmatmul.f32.gmra.mxu0 %v450
    %v525 = vpop.f32.mrf.mxu0
    %v526 = vadd.f32 0.0, %v525
    %527 = vmatmul.f32.gmra.mxu0 %v453
    %v528 = vpop.f32.mrf.mxu0
    %v529 = vadd.f32 0.0, %v528
    %530 = vdwg.mxu0
    %v531 = vperm.slane %v79, 3
    %532 = vmatpush.msra.mxu0 0.0
    %533 = vmatpush.msra.mxu0 0.0
    %534 = vmatpush.msra.mxu0 0.0
    %535 = vmatpush.msra.mxu0 0.0
    %536 = vmatpush.msra.mxu0 0.0
    %537 = vmatpush.msra.mxu0 0.0
    %538 = vmatpush.msra.mxu0 0.0
    %539 = vmatpush.msra.mxu0 0.0
    %540 = vmatpush.msra.mxu0 %v492
    %541 = vmatpush.msra.mxu0 %v491
    %542 = vmatpush.msra.mxu0 %v490
    %543 = vmatpush.msra.mxu0 %v489
    %544 = vmatpush.msra.mxu0 %v488
    %545 = vmatpush.msra.mxu0 %v487
    %546 = vmatpush.msra.mxu0 %v486
    %547 = vmatpush.msra.mxu0 %v485
    %548 = vmatmul.f32.gmra.mxu0 %v444
    %v549 = vpop.f32.mrf.mxu0
    %v550 = vadd.f32 %v531, %v549
    %551 = vmatmul.f32.gmra.mxu0 %v447
    %v552 = vpop.f32.mrf.mxu0
    %v553 = vadd.f32 %v531, %v552
    %554 = vmatmul.f32.gmra.mxu0 %v450
    %v555 = vpop.f32.mrf.mxu0
    %v556 = vadd.f32 %v531, %v555
    %557 = vmatmul.f32.gmra.mxu0 %v453
    %v558 = vpop.f32.mrf.mxu0
    %v559 = vadd.f32 %v531, %v558
    %560 = vdwg.mxu0
    %v565 = vrot.slane %v473, 7
    %v566 = vrot.slane %v476, 7
    %v567 = vsel %vm270, %v565, %v566
    %v568 = vrot.slane %v479, 7
    %v569 = vsel %vm270, %v566, %v568
    %v570 = vrot.slane %v482, 7
    %v571 = vsel %vm270, %v568, %v570
    %v576 = vsel %vm270, 0.0, %v565
    %v577 = vsel %vm287, 0.0, %v576
    %v578 = vsel %vm288, 0.0, %v567
    %v579 = vsel %vm289, 0.0, %v569
    %v580 = vsel %vm290, 0.0, %v571
    %v581 = vadd.f32 %v550, %v577
    %v582 = vadd.f32 %v553, %v578
    %v583 = vadd.f32 %v556, %v579
    %v584 = vadd.f32 %v559, %v580
    %v589 = vrot.slane %v520, 1
    %v590 = vrot.slane %v523, 1
    %v591 = vsel %vm303, %v589, %v590
    %v592 = vrot.slane %v526, 1
    %v593 = vsel %vm303, %v590, %v592
    %v594 = vrot.slane %v529, 1
    %v595 = vsel %vm303, %v592, %v594
    %v600 = vsel %vm303, %v594, 0.0
    %v601 = vsel %vm320, 0.0, %v591
    %v602 = vsel %vm321, 0.0, %v593
    %v603 = vsel %vm322, 0.0, %v595
    %v604 = vsel %vm323, 0.0, %v600
    %v605 = vadd.f32 %v581, %v601
    %v606 = vadd.f32 %v582, %v602
    %v607 = vadd.f32 %v583, %v603
    %v608 = vadd.f32 %v584, %v604
    %v609 = vsel %vm332, %v605, 0.0
    %610 = vadd.xlane.f32.xlu0 %v609
    %v611 = vpop.xlane.xlu0 %610
    %v612 = vsel %vm332, %v606, 0.0
    %613 = vadd.xlane.f32.xlu0 %v612
    %v614 = vpop.xlane.xlu0 %613
    %v615 = vsel %vm332, %v607, 0.0
    %616 = vadd.xlane.f32.xlu0 %v615
    %v617 = vpop.xlane.xlu0 %616
    %v618 = vsel %vm332, %v608, 0.0
    %619 = vadd.xlane.f32.xlu0 %v618
    %v620 = vpop.xlane.xlu0 %619
    %v621 = vmul.f32 %v611, 0.015625
    %v622 = vmul.f32 %v614, 0.015625
    %v623 = vmul.f32 %v617, 0.015625
    %v624 = vmul.f32 %v620, 0.015625
    %v625 = vsub.f32 %v605, %v621
    %v626 = vsub.f32 %v606, %v622
    %v627 = vsub.f32 %v607, %v623
    %v628 = vsub.f32 %v608, %v624
    %v629 = vmul.f32 %v625, %v625
    %v630 = vmul.f32 %v626, %v626
    %v631 = vmul.f32 %v627, %v627
    %v632 = vmul.f32 %v628, %v628
    %v633 = vsel %vm332, %v629, 0.0
    %634 = vadd.xlane.f32.xlu0 %v633
    %v635 = vpop.xlane.xlu0 %634
    %v636 = vsel %vm332, %v630, 0.0
    %637 = vadd.xlane.f32.xlu0 %v636
    %v638 = vpop.xlane.xlu0 %637
    %v639 = vsel %vm332, %v631, 0.0
    %640 = vadd.xlane.f32.xlu0 %v639
    %v641 = vpop.xlane.xlu0 %640
    %v642 = vsel %vm332, %v632, 0.0
    %643 = vadd.xlane.f32.xlu0 %v642
    %v644 = vpop.xlane.xlu0 %643
    %v645 = vmul.f32 %v635, 0.015625
    %v646 = vmul.f32 %v638, 0.015625
    %v647 = vmul.f32 %v641, 0.015625
    %v648 = vmul.f32 %v644, 0.015625
    %v649 = vadd.f32 %v645, 1e-05
    %v650 = vadd.f32 %v646, 1e-05
    %v651 = vadd.f32 %v647, 1e-05
    %v652 = vadd.f32 %v648, 1e-05
    %v653 = vrsqrt.pop %v649
    %v654 = vmul.f32 %v653, %v649
    %v655 = vmul.f32 %v654, %v653
    %v656 = vmul.f32 0.5, %v655
    %v657 = vsub.f32 1.5, %v656
    %v658 = vmul.f32 %v653, %v657
    %vm659 = vweird.f32 %v649
    %vm660 = vweird.f32 %v653
    %vm661 = vmor %vm659, %vm660
    %v662 = vsel %vm661, %v653, %v658
    %v663 = vrsqrt.pop %v650
    %v664 = vmul.f32 %v663, %v650
    %v665 = vmul.f32 %v664, %v663
    %v666 = vmul.f32 0.5, %v665
    %v667 = vsub.f32 1.5, %v666
    %v668 = vmul.f32 %v663, %v667
    %vm669 = vweird.f32 %v650
    %vm670 = vweird.f32 %v663
    %vm671 = vmor %vm669, %vm670
    %v672 = vsel %vm671, %v663, %v668
    %v673 = vrsqrt.pop %v651
    %v674 = vmul.f32 %v673, %v651
    %v675 = vmul.f32 %v674, %v673
    %v676 = vmul.f32 0.5, %v675
    %v677 = vsub.f32 1.5, %v676
    %v678 = vmul.f32 %v673, %v677
    %vm679 = vweird.f32 %v651
    %vm680 = vweird.f32 %v673
    %vm681 = vmor %vm679, %vm680
    %v682 = vsel %vm681, %v673, %v678
    %v683 = vrsqrt.pop %v652
    %v684 = vmul.f32 %v683, %v652
    %v685 = vmul.f32 %v684, %v683
    %v686 = vmul.f32 0.5, %v685
    %v687 = vsub.f32 1.5, %v686
    %v688 = vmul.f32 %v683, %v687
    %vm689 = vweird.f32 %v652
    %vm690 = vweird.f32 %v683
    %vm691 = vmor %vm689, %vm690
    %v692 = vsel %vm691, %v683, %v688
    %v693 = vmul.f32 %v625, %v662
    %v694 = vmul.f32 %v626, %v672
    %v695 = vmul.f32 %v627, %v682
    %v696 = vmul.f32 %v628, %v692
    %v697 = vperm.slane %v79, 4
    %v698 = vmul.f32 %v693, %v697
    %v699 = vmul.f32 %v694, %v697
    %v700 = vmul.f32 %v695, %v697
    %v701 = vmul.f32 %v696, %v697
    %v702 = vperm.slane %v79, 5
    %v703 = vadd.f32 %v698, %v702
    %v704 = vadd.f32 %v699, %v702
    %v705 = vadd.f32 %v700, %v702
    %v706 = vadd.f32 %v701, %v702
    %v707 = vmax.f32 %v703, 0.0
    %v708 = vmax.f32 %v704, 0.0
    %v709 = vmax.f32 %v705, 0.0
    %v710 = vmax.f32 %v706, 0.0
    %712 = vset.pattern.permute.xlu0 0
    %713 = vperm.xlu0 %712, %v79
    %v714 = vpop.permute.xlu0 %713
    %v715 = vrot.slane %v79, 6
    %v716 = vrot.slane %v714, 7
    %v718 = vsel %vm332, %v715, 0
    %v721 = vsel %vm332, %v707, 0
    %v724 = vsel %vm332, %v708, 0
    %v727 = vsel %vm332, %v709, 0
    %v730 = vsel %vm332, %v710, 0
    %732 = vmatpush.xpose.msra.mxu0 0.0
    %733 = vmatpush.xpose.msra.mxu0 0.0
    %734 = vmatpush.xpose.msra.mxu0 0.0
    %735 = vmatpush.xpose.msra.mxu0 0.0
    %736 = vmatpush.xpose.msra.mxu0 0.0
    %737 = vmatpush.xpose.msra.mxu0 0.0
    %738 = vmatpush.xpose.msra.mxu0 0.0
    %739 = vmatpush.xpose.msra.mxu0 0.0
    %740 = vmatpush.xpose.msra.mxu0 0.0
    %741 = vmatpush.xpose.msra.mxu0 0.0
    %742 = vmatpush.xpose.msra.mxu0 0.0
    %743 = vmatpush.xpose.msra.mxu0 0.0
    %744 = vmatpush.xpose.msra.mxu0 %v730
    %745 = vmatpush.xpose.msra.mxu0 %v727
    %746 = vmatpush.xpose.msra.mxu0 %v724
    %747 = vmatpush.xpose.msra.mxu0 %v721
    %748 = vmatmul.f32.gmra.mxu0 %v718
    %v749 = vpop.f32.mrf.mxu0
    %v750 = vadd.f32 %v716, %v749
    %751 = vdwg.mxu0
    %vm752 = vcmask 253952
    %753 = vst.msk [vmem:[#allocation10] sm:$0x1] %vm752, %v750
    // Predicated region
    $region34: #{tpu_custom_call.1} parent=1 // pred_check
      _
    $region35: #{tpu_custom_call.1} parent=1 // pred_check_branch
      %755 = sbr.rel (0) target = $region37
    $region36: #{tpu_custom_call.1} parent=1 // pred_region
      %757 = vsyncadd [#allocation4], 0
      %s759 = sshll.u32 [#allocation10], 4
      %s760 = int_to_ptr.vmem [resolvable:$true] %s759
      %s761 = sshll.u32 %s4, 4
      %s762 = int_to_ptr.hbm [resolvable:$true] %s761
      %764 = dma.vmem_to_hbm [thread:$0]  %s760, 16, %s762, [#allocation4]
    $region37: #{tpu_custom_call.1} parent=1 // pred_fallthru
      _
    // Predicated region
    $region38: #{tpu_custom_call.1} parent=1 // pred_check
      _
    $region39: #{tpu_custom_call.1} parent=1 // pred_check_branch
      %766 = sbr.rel (0) target = $region41
    $region40: #{tpu_custom_call.1} parent=1 // pred_region
      %768 = dma.done [#allocation4], 16
    $region41: #{tpu_custom_call.1} parent=1 // pred_fallthru
      _
    %769 = vsyncpa [#allocation3], 1
    %770 = vsyncpa [#allocation6], 1
    %771 = vsyncpa [#allocation9], 1
    %772 = vsyncpa [#allocation4], 1

</llo_original>
